<compile_context>
chip_gen: v7x
topology: tpu7x:2x2x1
jax: 0.10.0
libtpu: 0.0.40
codegen_flags: <defaults>
</compile_context>

<pallas_src>
import functools

import jax
import jax.numpy as jnp
from jax.experimental import pallas as pl
from jax.experimental.pallas import tpu as pltpu


_LANE = 128
_SMALL_S_MAX = 256      # realistic MatchingNetworks shapes go through this path
_TS_CAP = 16384         # lane-tile cap; keeps compiler intermediates comfortable


# --------------------------------------------------------------------------
# Small path: one full-extent block, natural layout, no transposes.
# --------------------------------------------------------------------------
def _attn_classify_small_kernel(sim_ref, y_ref, out_ref):
    """sim_ref: (S, B)  y_ref: (S, B, C)  out_ref: (S, C)."""
    sim = sim_ref[...].astype(jnp.float32)                  # (S, B)
    B = sim.shape[1]

    # Softmax over the batch axis (legacy nn.Softmax() dim=1 on 2-D input).
    m = jnp.max(sim, axis=-1, keepdims=True)                # (S, 1)
    e = jnp.exp(sim - m)                                    # (S, B)
    inv = 1.0 / jnp.sum(e, axis=-1, keepdims=True)          # exact divide
    p = e * inv                                             # (S, B)

    y = y_ref[...].astype(jnp.float32)                      # (S, B, C)
    acc = p[:, 0:1] * y[:, 0, :]                            # (S, C)
    for b in range(1, B):
        acc = acc + p[:, b:b + 1] * y[:, b, :]
    out_ref[...] = acc.astype(out_ref.dtype)


def _attn_classify_small(similarities, support_set_y):
    S, B = similarities.shape
    _, _, C = support_set_y.shape
    return pl.pallas_call(
        _attn_classify_small_kernel,
        out_shape=jax.ShapeDtypeStruct((S, C), similarities.dtype),
        grid=(1,),
        in_specs=[
            pl.BlockSpec((S, B), lambda i: (0, 0)),
            pl.BlockSpec((S, B, C), lambda i: (0, 0, 0)),
        ],
        out_specs=pl.BlockSpec((S, C), lambda i: (0, 0)),
    )(similarities, support_set_y)


# --------------------------------------------------------------------------
# Wide path: lane-major (S on lanes), grid over S tiles.
# --------------------------------------------------------------------------
def _attn_classify_wide_kernel(sim_ref, y_ref, out_ref, *, total_s):
    """sim_ref: (B, TS) f32   y_ref: (B*C, TS)   out_ref: (C, TS); S on lanes."""
    B = sim_ref.shape[0]
    C = out_ref.shape[0]
    ts = sim_ref.shape[1]

    # Validity mask for the (possibly ragged) final tile: padded lanes hold
    # uninitialized VMEM, so keep them finite and scrub them before the store.
    base = pl.program_id(0) * ts
    lane = jax.lax.broadcasted_iota(jnp.int32, (1, ts), 1)
    valid = (base + lane) < total_s                          # (1, TS)

    sim = sim_ref[...].astype(jnp.float32)                   # (B, TS)
    sim = jnp.where(valid, sim, 0.0)

    # Softmax over the tiny static B axis: unrolled VPU max / sum, EUP exp.
    m = sim[0:1, :]
    for b in range(1, B):
        m = jnp.maximum(m, sim[b:b + 1, :])
    e = jnp.exp(sim - m)                                      # (B, TS)
    denom = e[0:1, :]
    for b in range(1, B):
        denom = denom + e[b:b + 1, :]
    inv = 1.0 / denom                                         # exact divide

    # Contraction over B: out[c, s] = sum_b softmax[b, s] * y[b*C + c, s]
    acc = (e[0:1, :] * inv) * y_ref[0:C, :].astype(jnp.float32)        # (C, TS)
    for b in range(1, B):
        acc = acc + (e[b:b + 1, :] * inv) * y_ref[b * C:(b + 1) * C, :].astype(jnp.float32)

    acc = jnp.where(valid, acc, 0.0)                          # scrub padded lanes
    out_ref[...] = acc.astype(out_ref.dtype)


def _round_up(x, m):
    return ((x + m - 1) // m) * m


def _pick_s_tile(S, B, C, y_itemsize, vmem_budget_bytes=16 * 1024 * 1024):
    """Largest lane-aligned S tile whose double-buffered blocks fit the budget,
    capped at _TS_CAP and at ~S/2 so the grid keeps >= 2 parallel steps (v7x
    has 2 TensorCores; v5e/v6e simply get the biggest tile)."""
    bytes_per_s = (
        2 * _round_up(B, 8) * 4                # sim blocks, f32, double-buffered
        + 2 * _round_up(B * C, 8) * y_itemsize  # y blocks, double-buffered
        + 2 * _round_up(C, 8) * 4               # out blocks
    )
    ts_budget = max(_LANE, (vmem_budget_bytes // bytes_per_s) // _LANE * _LANE)
    ts_half = _round_up((S + 1) // 2, _LANE)    # >= 2 grid steps
    return max(_LANE, min(_TS_CAP, ts_budget, ts_half))


def _attn_classify_wide(similarities, support_set_y, compact_y_dtype):
    S, B = similarities.shape
    _, _, C = support_set_y.shape

    y = support_set_y
    if compact_y_dtype is not None and y.dtype != compact_y_dtype:
        # One-hot 0/1 values are exact in bf16; halves the dominant HBM stream.
        y = y.astype(compact_y_dtype)

    # Layout plumbing (single fused XLA copy for y): put the big S axis on
    # lanes and flatten (B, C) so every operand is a dense 2-D slab.
    sim_t = jnp.transpose(similarities, (1, 0))               # (B, S)   tiny
    y_t = jnp.transpose(y, (1, 2, 0)).reshape(B * C, S)       # (B*C, S)

    ts = _pick_s_tile(S, B, C, y_t.dtype.itemsize)
    grid = (pl.cdiv(S, ts),)

    kernel = functools.partial(_attn_classify_wide_kernel, total_s=S)

    itemsize = jnp.dtype(similarities.dtype).itemsize
    cost = pl.CostEstimate(
        flops=int(S) * B * (2 * C + 5),
        transcendentals=int(S) * B,
        bytes_accessed=int(S * B * itemsize
                           + S * B * C * y_t.dtype.itemsize
                           + S * C * itemsize),
    )

    out_t = pl.pallas_call(
        kernel,
        out_shape=jax.ShapeDtypeStruct((C, S), similarities.dtype),
        grid=grid,
        in_specs=[
            pl.BlockSpec((B, ts), lambda i: (0, i)),
            pl.BlockSpec((B * C, ts), lambda i: (0, i)),
        ],
        out_specs=pl.BlockSpec((C, ts), lambda i: (0, i)),
        compiler_params=pltpu.CompilerParams(
            dimension_semantics=("parallel",),
            vmem_limit_bytes=32 * 1024 * 1024,
        ),
        cost_estimate=cost,
    )(sim_t, y_t)

    return jnp.transpose(out_t, (1, 0))                       # (S, C)  small


# --------------------------------------------------------------------------
# Public entry point (matches AttentionalClassify.forward).
# --------------------------------------------------------------------------
def attentional_classify(similarities, support_set_y, *,
                         compact_y_dtype=jnp.bfloat16):
    """similarities: (S, B) float; support_set_y: (S, B, C) one-hot float.

    Returns preds of shape (S, C).  `compact_y_dtype` (wide path only) stores
    the one-hot stream compactly in HBM; 0/1 values are exact.  Pass None to
    keep the original dtype for non-one-hot support_set_y.
    """
    S, B = similarities.shape
    S2, B2, C = support_set_y.shape
    assert S == S2 and B == B2

    if S <= _SMALL_S_MAX:
        return _attn_classify_small(similarities, support_set_y)
    return _attn_classify_wide(similarities, support_set_y, compact_y_dtype)


def _reference(similarities, support_set_y):
    sm = jax.nn.softmax(similarities, axis=-1)
    return jnp.einsum("sb,sbc->sc", sm, support_set_y)


if __name__ == "__main__":
    key = jax.random.PRNGKey(0)
    k_sim, k_lbl, k_sim2, k_lbl2 = jax.random.split(key, 4)

    # 1) Realistic MatchingNetworks shapes (num_classes_per_set=5):
    #    seq_len=8, batch=4, num_classes=5  -> small single-block path.
    seq_len, batch, num_classes = 8, 4, 5
    similarities = jax.random.normal(k_sim, (seq_len, batch), dtype=jnp.float32)
    labels = jax.random.randint(k_lbl, (seq_len, batch), 0, num_classes)
    support_set_y = jax.nn.one_hot(labels, num_classes, dtype=jnp.float32)

    out = jax.block_until_ready(attentional_classify(similarities, support_set_y))
    ref = _reference(similarities, support_set_y)
    assert out.shape == (seq_len, num_classes)
    assert jnp.allclose(out, ref, atol=1e-5, rtol=1e-5), "small-path mismatch"

    # 2) Larger S -> exercises the lane-major tiled path (grid of 2 parallel
    #    tiles, ragged final tile, bf16 one-hot stream).
    S2, B2, C2 = 1000, 4, 5
    sim2 = jax.random.normal(k_sim2, (S2, B2), dtype=jnp.float32)
    lbl2 = jax.random.randint(k_lbl2, (S2, B2), 0, C2)
    y2 = jax.nn.one_hot(lbl2, C2, dtype=jnp.float32)

    out2 = jax.block_until_ready(attentional_classify(sim2, y2))
    ref2 = _reference(sim2, y2)
    assert out2.shape == (S2, C2)
    assert jnp.allclose(out2, ref2, atol=1e-5, rtol=1e-5), "wide-path mismatch"

    print("KERNEL_OK")
</pallas_src>

<mosaic_0001>
module attributes {stable_mosaic.version = 11 : i64} {
  func.func @_attn_classify_small_kernel(%arg0: i32, %arg1: memref<8x4xf32, #tpu.memory_space<vmem>>, %arg2: memref<8x4x5xf32, #tpu.memory_space<vmem>>, %arg3: memref<8x5xf32, #tpu.memory_space<vmem>>) attributes {dimension_semantics = [#tpu.dimension_semantics<arbitrary>], iteration_bounds = array<i64: 1>, scalar_prefetch = 0 : i64, scratch_operands = 0 : i64, tpu.core_type = #tpu.core_type<tc>, window_params = [{pipeline_mode = #tpu.pipeline_mode<synchronous>, transform_indices = @transform_0, window_bounds = array<i64: 8, 4>}, {pipeline_mode = #tpu.pipeline_mode<synchronous>, transform_indices = @transform_1, window_bounds = array<i64: 8, 4, 5>}, {pipeline_mode = #tpu.pipeline_mode<synchronous>, transform_indices = @transform_2, window_bounds = array<i64: 8, 5>}]} {
    %c0 = arith.constant 0 : index
    %c0_0 = arith.constant 0 : index
    %0 = vector.load %arg1[%c0, %c0_0] : memref<8x4xf32, #tpu.memory_space<vmem>>, vector<8x4xf32>
    %cst = arith.constant dense<0xFF800000> : vector<8xf32>
    %1 = vector.multi_reduction <maximumf>, %0, %cst [1] : vector<8x4xf32> to vector<8xf32>
    %2 = vector.shape_cast %1 : vector<8xf32> to vector<8x1xf32>
    %3 = vector.broadcast %2 : vector<8x1xf32> to vector<8x4xf32>
    %4 = arith.subf %0, %3 : vector<8x4xf32>
    %5 = math.exp %4 : vector<8x4xf32>
    %cst_1 = arith.constant dense<0.000000e+00> : vector<8xf32>
    %6 = vector.multi_reduction <add>, %5, %cst_1 [1] : vector<8x4xf32> to vector<8xf32>
    %7 = vector.shape_cast %6 : vector<8xf32> to vector<8x1xf32>
    %cst_2 = arith.constant 1.000000e+00 : f32
    %8 = vector.broadcast %cst_2 : f32 to vector<8x1xf32>
    %9 = arith.divf %8, %7 : vector<8x1xf32>
    %10 = vector.broadcast %9 : vector<8x1xf32> to vector<8x4xf32>
    %11 = arith.mulf %5, %10 : vector<8x4xf32>
    %c0_3 = arith.constant 0 : index
    %c0_4 = arith.constant 0 : index
    %c0_5 = arith.constant 0 : index
    %12 = vector.load %arg2[%c0_3, %c0_4, %c0_5] : memref<8x4x5xf32, #tpu.memory_space<vmem>>, vector<8x4x5xf32>
    %13 = vector.extract_strided_slice %11 {offsets = [0, 0], sizes = [8, 1], strides = [1, 1]} : vector<8x4xf32> to vector<8x1xf32>
    %14 = vector.extract_strided_slice %12 {offsets = [0, 0, 0], sizes = [8, 1, 5], strides = [1, 1, 1]} : vector<8x4x5xf32> to vector<8x1x5xf32>
    %15 = vector.shape_cast %14 : vector<8x1x5xf32> to vector<8x5xf32>
    %16 = vector.broadcast %13 : vector<8x1xf32> to vector<8x5xf32>
    %17 = arith.mulf %16, %15 : vector<8x5xf32>
    %18 = vector.extract_strided_slice %11 {offsets = [0, 1], sizes = [8, 1], strides = [1, 1]} : vector<8x4xf32> to vector<8x1xf32>
    %19 = vector.extract_strided_slice %12 {offsets = [0, 1, 0], sizes = [8, 1, 5], strides = [1, 1, 1]} : vector<8x4x5xf32> to vector<8x1x5xf32>
    %20 = vector.shape_cast %19 : vector<8x1x5xf32> to vector<8x5xf32>
    %21 = vector.broadcast %18 : vector<8x1xf32> to vector<8x5xf32>
    %22 = arith.mulf %21, %20 : vector<8x5xf32>
    %23 = arith.addf %17, %22 : vector<8x5xf32>
    %24 = vector.extract_strided_slice %11 {offsets = [0, 2], sizes = [8, 1], strides = [1, 1]} : vector<8x4xf32> to vector<8x1xf32>
    %25 = vector.extract_strided_slice %12 {offsets = [0, 2, 0], sizes = [8, 1, 5], strides = [1, 1, 1]} : vector<8x4x5xf32> to vector<8x1x5xf32>
    %26 = vector.shape_cast %25 : vector<8x1x5xf32> to vector<8x5xf32>
    %27 = vector.broadcast %24 : vector<8x1xf32> to vector<8x5xf32>
    %28 = arith.mulf %27, %26 : vector<8x5xf32>
    %29 = arith.addf %23, %28 : vector<8x5xf32>
    %30 = vector.extract_strided_slice %11 {offsets = [0, 3], sizes = [8, 1], strides = [1, 1]} : vector<8x4xf32> to vector<8x1xf32>
    %31 = vector.extract_strided_slice %12 {offsets = [0, 3, 0], sizes = [8, 1, 5], strides = [1, 1, 1]} : vector<8x4x5xf32> to vector<8x1x5xf32>
    %32 = vector.shape_cast %31 : vector<8x1x5xf32> to vector<8x5xf32>
    %33 = vector.broadcast %30 : vector<8x1xf32> to vector<8x5xf32>
    %34 = arith.mulf %33, %32 : vector<8x5xf32>
    %35 = arith.addf %29, %34 : vector<8x5xf32>
    %c0_6 = arith.constant 0 : index
    %c0_7 = arith.constant 0 : index
    %36 = vector.load %arg3[%c0_6, %c0_7] : memref<8x5xf32, #tpu.memory_space<vmem>>, vector<8x5xf32>
    tpu.vector_store %arg3[%c0_6, %c0_7], %35 {strides = array<i32>} : memref<8x5xf32, #tpu.memory_space<vmem>>, vector<8x5xf32>,
    return
  }
  func.func @transform_0(%arg0: i32) -> (i32, i32) {
    %c0_i32 = arith.constant 0 : i32
    %c0_i32_0 = arith.constant 0 : i32
    %c0_i32_1 = arith.constant 0 : i32
    return %c0_i32, %c0_i32_0 : i32, i32
  }
  func.func @transform_1(%arg0: i32) -> (i32, i32, i32) {
    %c0_i32 = arith.constant 0 : i32
    %c0_i32_0 = arith.constant 0 : i32
    %c0_i32_1 = arith.constant 0 : i32
    %c0_i32_2 = arith.constant 0 : i32
    return %c0_i32, %c0_i32_0, %c0_i32_1 : i32, i32, i32
  }
  func.func @transform_2(%arg0: i32) -> (i32, i32) {
    %c0_i32 = arith.constant 0 : i32
    %c0_i32_0 = arith.constant 0 : i32
    %c0_i32_1 = arith.constant 0 : i32
    return %c0_i32, %c0_i32_0 : i32, i32
  }
}

</mosaic_0001>

<llo_original>
// kernel: tpu_custom_call.1
$region0: #{tpu_custom_call.1}
  #allocation0 [shape = 'u32[]', space=smem, size = 0x4, offset = 0x4, fixed_abs, tag = 'smem constant byte address 0x4 - core index']
  #allocation1 [shape = 'u32[144,128]{1,0:T(1,128)}', space=vmem, size = 0x12000, scoped, tag = 'internal scratch']
  %s0 = inlined_call_operand.vmem [shape: f32[8,4], index: 0, kind: input, shape index: {}]
  %s1 = inlined_call_operand.vmem [shape: f32[8,4,5], index: 1, kind: input, shape index: {}]
  %s2 = inlined_call_operand.hbm [shape: f32[8,5], index: 2, kind: output, shape index: {}]
  %s3 = sld [smem:[#allocation0]]
  $region18: #{tpu_custom_call.1} parent=0
    _
  %s5 = ssub.s32 1, %s3
  %s6 = scalar_select 0, %s5, %s3
  $region1: #{tpu_custom_call.1} parent=0
    #allocation2 [shape = 'u8[4096]{0}', space=vmem, size = 0x1000, scoped, tag = 'output window, operand 0, single buffered']
    #allocation3 [shape = 's32[1]{0}', space=sflag, size = 0x4, scoped, tag = 'scoped memory for tpu_custom_call.1']
    %7 = vsyncpa [#allocation3], 0
    // Predicated region
    $region2: #{tpu_custom_call.1} parent=1 // pred_check
      _
    $region3: #{tpu_custom_call.1} parent=1 // pred_check_branch
      %9 = sbr.rel (0) target = $region5
    $region4: #{tpu_custom_call.1} parent=1 // pred_region
      _
    $region5: #{tpu_custom_call.1} parent=1 // pred_fallthru
      _
    // Predicated region
    $region6: #{tpu_custom_call.1} parent=1 // pred_check
      _
    $region7: #{tpu_custom_call.1} parent=1 // pred_check_branch
      %11 = sbr.rel (0) target = $region9
    $region8: #{tpu_custom_call.1} parent=1 // pred_region
      _
    $region9: #{tpu_custom_call.1} parent=1 // pred_fallthru
      _
    %v12 = vld [vmem:[%s0] sm:$0xff]
    %vm13 = vcmask 31744
    %v14 = vsel %vm13, %v12, -inf
    %15 = vmax.xlane.f32.xlu0 %v14
    %v16 = vpop.xlane.xlu0 %15
    %v17 = vsub.f32 %v12, %v16
    %v18 = vmul.f32 %v17, 1.442695
    %v19 = vpow.pop %v18
    %v20 = vsel %vm13, %v19, 0.0
    %21 = vadd.xlane.f32.xlu0 %v20
    %v22 = vpop.xlane.xlu0 %21
    %v23 = vrcp.pop %v22
    %v24 = vmul.f32 1.0, %v23
    %v25 = vmul.f32 %v19, %v24
    %v26 = vld [vmem:[%s1] sm:$0xf]
    %v27 = vld [vmem:[%s1 + $0x4] sm:$0xf]
    %v28 = vld [vmem:[%s1 + $0x8] sm:$0xf]
    %v29 = vld [vmem:[%s1 + $0xc] sm:$0xf]
    %v30 = vld [vmem:[%s1 + $0x10] sm:$0xf]
    %v31 = vld [vmem:[%s1 + $0x14] sm:$0xf]
    %v32 = vld [vmem:[%s1 + $0x18] sm:$0xf]
    %v33 = vld [vmem:[%s1 + $0x1c] sm:$0xf]
    %35 = vset.pattern.permute.xlu0 0
    %36 = vperm.xlu0 %35, %v25
    %v37 = vpop.permute.xlu0 %36
    %v47 = vrot.slane %v27, 7
    %vm48 = vcmask 1041409
    %v49 = vsel %vm48, %v47, %v26
    %v50 = vrot.slane %v28, 6
    %vm51 = vcmask 1042434
    %v52 = vsel %vm51, %v50, %v49
    %v53 = vrot.slane %v29, 5
    %vm54 = vcmask 1043459
    %v55 = vsel %vm54, %v53, %v52
    %v56 = vrot.slane %v30, 4
    %vm57 = vcmask 1044484
    %v58 = vsel %vm57, %v56, %v55
    %v59 = vrot.slane %v31, 3
    %vm60 = vcmask 1045509
    %v61 = vsel %vm60, %v59, %v58
    %v62 = vrot.slane %v32, 2
    %vm63 = vcmask 1046534
    %v64 = vsel %vm63, %v62, %v61
    %v65 = vrot.slane %v33, 1
    %vm66 = vcmask 1047559
    %v67 = vsel %vm66, %v65, %v64
    %v69 = vmul.f32 %v37, %v67
    %70 = vset.pattern.permute.xlu0 1
    %71 = vperm.xlu0 %70, %v25
    %v72 = vpop.permute.xlu0 %71
    %v74 = vrot.slane %v26, 1
    %v75 = vsel %vm48, %v27, %v74
    %v76 = vrot.slane %v28, 7
    %v77 = vsel %vm51, %v76, %v75
    %v78 = vrot.slane %v29, 6
    %v79 = vsel %vm54, %v78, %v77
    %v80 = vrot.slane %v30, 5
    %v81 = vsel %vm57, %v80, %v79
    %v82 = vrot.slane %v31, 4
    %v83 = vsel %vm60, %v82, %v81
    %v84 = vrot.slane %v32, 3
    %v85 = vsel %vm63, %v84, %v83
    %v86 = vrot.slane %v33, 2
    %v87 = vsel %vm66, %v86, %v85
    %v89 = vmul.f32 %v72, %v87
    %v90 = vadd.f32 %v69, %v89
    %91 = vset.pattern.permute.xlu0 2
    %92 = vperm.xlu0 %91, %v25
    %v93 = vpop.permute.xlu0 %92
    %v95 = vrot.slane %v26, 2
    %v96 = vrot.slane %v27, 1
    %v97 = vsel %vm48, %v96, %v95
    %v98 = vsel %vm51, %v28, %v97
    %v99 = vrot.slane %v29, 7
    %v100 = vsel %vm54, %v99, %v98
    %v101 = vrot.slane %v30, 6
    %v102 = vsel %vm57, %v101, %v100
    %v103 = vrot.slane %v31, 5
    %v104 = vsel %vm60, %v103, %v102
    %v105 = vrot.slane %v32, 4
    %v106 = vsel %vm63, %v105, %v104
    %v107 = vrot.slane %v33, 3
    %v108 = vsel %vm66, %v107, %v106
    %v110 = vmul.f32 %v93, %v108
    %v111 = vadd.f32 %v90, %v110
    %112 = vset.pattern.permute.xlu0 3
    %113 = vperm.xlu0 %112, %v25
    %v114 = vpop.permute.xlu0 %113
    %v116 = vrot.slane %v26, 3
    %v117 = vrot.slane %v27, 2
    %v118 = vsel %vm48, %v117, %v116
    %v119 = vrot.slane %v28, 1
    %v120 = vsel %vm51, %v119, %v118
    %v121 = vsel %vm54, %v29, %v120
    %v122 = vrot.slane %v30, 7
    %v123 = vsel %vm57, %v122, %v121
    %v124 = vrot.slane %v31, 6
    %v125 = vsel %vm60, %v124, %v123
    %v126 = vrot.slane %v32, 5
    %v127 = vsel %vm63, %v126, %v125
    %v128 = vrot.slane %v33, 4
    %v129 = vsel %vm66, %v128, %v127
    %v131 = vmul.f32 %v114, %v129
    %v132 = vadd.f32 %v111, %v131
    %vm133 = vcmask 39936
    %134 = vst.msk [vmem:[#allocation2] sm:$0xff] %vm133, %v132
    // Predicated region
    $region10: #{tpu_custom_call.1} parent=1 // pred_check
      _
    $region11: #{tpu_custom_call.1} parent=1 // pred_check_branch
      %136 = sbr.rel (0) target = $region13
    $region12: #{tpu_custom_call.1} parent=1 // pred_region
      %s138 = ssub.s32 128, 128
      %139 = vsyncadd [#allocation3], %s138
      %s141 = sshll.u32 [#allocation2], 4
      %s142 = int_to_ptr.vmem [resolvable:$true] %s141
      %144 = dma.vmem_to_hbm [thread:$0]  %s142, 128, %s2, [#allocation3]
    $region13: #{tpu_custom_call.1} parent=1 // pred_fallthru
      _
    // Predicated region
    $region14: #{tpu_custom_call.1} parent=1 // pred_check
      _
    $region15: #{tpu_custom_call.1} parent=1 // pred_check_branch
      %146 = sbr.rel (0) target = $region17
    $region16: #{tpu_custom_call.1} parent=1 // pred_region
      %147 = dma.done [#allocation3], 128
    $region17: #{tpu_custom_call.1} parent=1 // pred_fallthru
      _
    %148 = vsyncpa [#allocation3], 1

</llo_original>
